<compile_context>
chip_gen: v6e
topology: v6e:2x2x1
jax: 0.10.0
libtpu: 0.0.40
codegen_flags: <defaults>
</compile_context>

<pallas_src>
import functools

import jax
import jax.numpy as jnp
from jax import lax
from jax.experimental import pallas as pl
from jax.experimental.pallas import tpu as pltpu


def _round_up(x, m):
    return -(-x // m) * m


# ----------------------------- Pallas GEMM kernel -----------------------------

def _mm_kernel(*refs, npairs, nk_list, in_act, out_act, want_stats):
    a_refs = refs[0:2 * npairs:2]
    b_refs = refs[1:2 * npairs:2]
    o_ref = refs[2 * npairs]
    if want_stats:
        stats_ref = refs[2 * npairs + 1]
        acc_ref = refs[2 * npairs + 2]
    else:
        acc_ref = refs[2 * npairs + 1]

    k = pl.program_id(2)
    total_nk = sum(nk_list)

    @pl.when(k == 0)
    def _():
        acc_ref[...] = jnp.zeros_like(acc_ref)

    def contrib(a_ref, b_ref):
        a = a_ref[...]
        if in_act == "relu":
            a = jnp.maximum(a, 0)
        elif in_act == "leaky_relu":
            a32 = a.astype(jnp.float32)
            a = jnp.where(a32 >= 0.0, a32, 0.2 * a32).astype(a_ref.dtype)
        acc_ref[...] += jnp.dot(a, b_ref[...],
                                preferred_element_type=jnp.float32)

    off = 0
    for p in range(npairs):
        lo, hi = off, off + nk_list[p]
        if npairs == 1:
            contrib(a_refs[p], b_refs[p])
        else:
            @pl.when((k >= lo) & (k < hi))
            def _(ar=a_refs[p], br=b_refs[p]):
                contrib(ar, br)
        off = hi

    @pl.when(k == total_nk - 1)
    def _():
        r = acc_ref[...]
        if want_stats:  # per-channel sum / sumsq for a following BatchNorm
            stats_ref[...] = jnp.stack(
                [jnp.sum(r, axis=0), jnp.sum(r * r, axis=0)], axis=0)[None]
        if out_act == "tanh":
            r = jnp.tanh(r)
        o_ref[...] = r.astype(o_ref.dtype)


def pallas_matmul_multi(pairs, in_act=None, out_act=None,
                        out_dtype=jnp.bfloat16, want_stats=False,
                        tm=512, tk=512, tn=512):
    """out_act(sum_p in_act(A_p) @ B_p).  A_p:(M,K_p) B_p:(K_p,N), bf16 in,
    f32 accumulation.  Optionally also returns per-M-tile (sum, sumsq) stats."""
    M = pairs[0][0].shape[0]
    N = pairs[0][1].shape[1]

    tm_eff = min(tm, _round_up(M, 16))
    Mp = _round_up(M, tm_eff)
    if N <= 128:
        tn_eff, Np = N, N
    else:
        Np = _round_up(N, 128)
        tn_eff = min(tn, Np)
        Np = _round_up(Np, tn_eff)
    ni, nj = Mp // tm_eff, Np // tn_eff

    a_list, b_list, nk_list, tk_list = [], [], [], []
    for (a, b) in pairs:
        K = a.shape[1]
        assert a.shape[0] == M and b.shape == (K, N)
        if K <= tk:
            Kp, tk_p = K, K
        else:
            Kp = _round_up(K, 128)
            tk_p = min(tk, Kp)
            Kp = _round_up(Kp, tk_p)
        nk_p = Kp // tk_p
        a = a.astype(jnp.bfloat16)
        b = b.astype(jnp.bfloat16)
        if (Mp, Kp) != a.shape:                     # skip pads when already aligned
            a = jnp.pad(a, ((0, Mp - M), (0, Kp - K)))
        if (Kp, Np) != b.shape:
            b = jnp.pad(b, ((0, Kp - K), (0, Np - N)))
        a_list.append(a)
        b_list.append(b)
        nk_list.append(nk_p)
        tk_list.append(tk_p)

    total_nk = sum(nk_list)
    in_specs = []
    off = 0
    for p in range(len(pairs)):
        nk_p, tk_p = nk_list[p], tk_list[p]

        def a_map(i, j, k, o=off, n=nk_p):
            kk = jnp.minimum(jnp.maximum(k - o, 0), n - 1)
            return (i, kk)

        def b_map(i, j, k, o=off, n=nk_p):
            kk = jnp.minimum(jnp.maximum(k - o, 0), n - 1)
            return (kk, j)

        in_specs.append(pl.BlockSpec((tm_eff, tk_p), a_map))
        in_specs.append(pl.BlockSpec((tk_p, tn_eff), b_map))
        off += nk_p

    out_specs = [pl.BlockSpec((tm_eff, tn_eff), lambda i, j, k: (i, j))]
    out_shapes = [jax.ShapeDtypeStruct((Mp, Np), out_dtype)]
    if want_stats:
        out_specs.append(pl.BlockSpec((1, 2, tn_eff), lambda i, j, k: (i, 0, j)))
        out_shapes.append(jax.ShapeDtypeStruct((ni, 2, Np), jnp.float32))

    kernel = functools.partial(
        _mm_kernel, npairs=len(pairs), nk_list=tuple(nk_list),
        in_act=in_act, out_act=out_act, want_stats=want_stats)

    operands = []
    for a, b in zip(a_list, b_list):
        operands.extend([a, b])

    results = pl.pallas_call(
        kernel,
        out_shape=tuple(out_shapes) if want_stats else out_shapes[0],
        grid_spec=pltpu.PrefetchScalarGridSpec(
            num_scalar_prefetch=0,
            grid=(ni, nj, total_nk),
            in_specs=in_specs,
            out_specs=out_specs if want_stats else out_specs[0],
            scratch_shapes=[pltpu.VMEM((tm_eff, tn_eff), jnp.float32)],
        ),
        compiler_params=pltpu.CompilerParams(
            dimension_semantics=("parallel", "parallel", "arbitrary")),
    )(*operands)

    if want_stats:
        out, stats = results
        return out[:M, :N], stats[:, :, :N]
    return results[:M, :N], None


# -------------------- Pallas per-channel sum/sumsq reduction -------------------

def _stats_kernel(x_ref, o_ref):
    @pl.when(pl.program_id(1) == 0)
    def _():
        o_ref[...] = jnp.zeros_like(o_ref)
    x = x_ref[...].astype(jnp.float32)
    o_ref[...] += jnp.stack([jnp.sum(x, axis=0), jnp.sum(x * x, axis=0)],
                            axis=0)[None]


def pallas_channel_stats(x2d, tm=1024):
    """Per-channel (sum, sumsq) of x2d (M, C).

    Rows are re-grouped into (M/g, g*C) so the minor (lane) dimension is at
    least 128 wide even for tiny channel counts — keeps loads/stores lane-dense
    and the VMEM layout compact.  The leading parallel grid axis of size 2
    hands half the reduction to each TensorCore of a megacore/v7x chip."""
    M, C = x2d.shape
    g = max(1, 128 // C) if C < 128 else 1
    Mg = _round_up(M, g)
    if Mg != M:
        x2d = jnp.pad(x2d, ((0, Mg - M), (0, 0)))   # zero rows: no effect on sums
    xr = x2d.reshape(Mg // g, g * C)
    Mr, Cr = xr.shape

    tms = min(tm, _round_up(Mr, 16))
    Mp = _round_up(Mr, 2 * tms)
    if Mp != Mr:
        xr = jnp.pad(xr, ((0, Mp - Mr), (0, 0)))
    npc = Mp // (2 * tms)
    partial = pl.pallas_call(
        _stats_kernel,
        out_shape=jax.ShapeDtypeStruct((2, 2, Cr), jnp.float32),
        grid_spec=pltpu.PrefetchScalarGridSpec(
            num_scalar_prefetch=0,
            grid=(2, npc),
            in_specs=[pl.BlockSpec((tms, Cr), lambda c, m, n=npc: (c * n + m, 0))],
            out_specs=pl.BlockSpec((1, 2, Cr), lambda c, m: (c, 0, 0)),
        ),
        compiler_params=pltpu.CompilerParams(
            dimension_semantics=("parallel", "arbitrary")),
    )(xr)
    stats = partial.sum(axis=0)                      # (2, g*C)
    return stats.reshape(2, g, C).sum(axis=1)        # (2, C)


def bn_scale_shift(stats, m_rows, gamma, beta, eps=1e-5):
    s, q = stats[0], stats[1]
    mean = s / m_rows
    var = jnp.maximum(q / m_rows - mean * mean, 0.0)  # clamp fp cancellation
    scale = gamma * lax.rsqrt(var + eps)
    shift = beta - mean * scale
    return scale, shift


# ------------------------------ conv glue (JAX) --------------------------------

def _extract_patches(xp, oh, ow, ksize, stride):
    """xp: padded NHWC -> (N*oh*ow, ksize*ksize*C) patches, (kh, kw, c) minor."""
    n, _, _, c = xp.shape
    pieces = []
    for kh in range(ksize):
        for kw in range(ksize):
            pieces.append(lax.slice(
                xp,
                (0, kh, kw, 0),
                (n, kh + stride * (oh - 1) + 1, kw + stride * (ow - 1) + 1, c),
                (1, stride, stride, 1)))
    return jnp.concatenate(pieces, axis=-1).reshape(n * oh * ow, ksize * ksize * c)


def _prep_piece(piece):
    """Apply a pending BatchNorm scale/shift (f32) to a raw tensor, cast bf16."""
    t, scale, shift = piece
    if scale is not None:
        t = t.astype(jnp.float32) * scale + shift
    return t.astype(jnp.bfloat16)


def conv_down(piece, w, act=None, want_stats=False, out_dtype=jnp.bfloat16):
    """Conv2d(k=4, s=2, p=1, bias=False).  piece = (x NHWC, scale|None, shift|None);
    w: (Cout, Cin, 4, 4).  `act` (leaky_relu / relu) is fused inside the GEMM."""
    # TODO(synk): patches are still materialized in HBM (bf16); an in-kernel im2col
    # via pl.ANY + manual DMA of overlapping row windows would remove that traffic.
    x = _prep_piece(piece)
    n, h, wd, cin = x.shape
    cout = w.shape[0]
    oh, ow = h // 2, wd // 2
    xp = jnp.pad(x, ((0, 0), (1, 1), (1, 1), (0, 0)))
    patches = _extract_patches(xp, oh, ow, 4, 2)                    # (M, 16*Cin)
    wm = jnp.transpose(w, (2, 3, 1, 0)).reshape(16 * cin, cout).astype(jnp.bfloat16)
    y, stats = pallas_matmul_multi([(patches, wm)], in_act=act,
                                   want_stats=want_stats, out_dtype=out_dtype)
    return y.reshape(n, oh, ow, cout), stats


def _convt_subpixel_weight(wt):
    """(Cin, Cout, 4, 4) ConvTranspose2d weight -> (4*Cin, 4*Cout) sub-pixel GEMM
    weight; rows ordered (dy, dx, ci), columns ordered (parity p=2*py+px, co)."""
    cin, cout = wt.shape[0], wt.shape[1]
    cols = []
    for py in (0, 1):
        for px in (0, 1):
            w4 = jnp.stack(
                [jnp.stack([wt[:, :, 3 - py - 2 * dy, 3 - px - 2 * dx]
                            for dx in (0, 1)], axis=0) for dy in (0, 1)], axis=0)
            cols.append(w4.reshape(4 * cin, cout))
    return jnp.concatenate(cols, axis=1).astype(jnp.bfloat16)


def conv_up(pieces, wt, act=None, out_act=None, out_dtype=jnp.bfloat16):
    """ConvTranspose2d(k=4, s=2, p=1, bias=False) via sub-pixel decomposition.
    `pieces` is the (virtual) channel concatenation of the input — the skip
    concat is never materialized; each piece becomes one (A, B) GEMM pair."""
    n, h, wd, _ = pieces[0][0].shape
    cout = wt.shape[1]
    pairs = []
    coff = 0
    for piece in pieces:
        x = _prep_piece(piece)
        c = x.shape[-1]
        xp = jnp.pad(x, ((0, 0), (1, 1), (1, 1), (0, 0)))
        patches = _extract_patches(xp, h + 1, wd + 1, 2, 1)         # (M, 4*c)
        pairs.append((patches, _convt_subpixel_weight(wt[coff:coff + c])))
        coff += c
    y, _ = pallas_matmul_multi(pairs, in_act=act, out_act=out_act,
                               out_dtype=out_dtype)
    # pixel-shuffle assembly of the 4 output parities
    Y = y.reshape(n, h + 1, wd + 1, 4, cout)
    rows = []
    for py in (0, 1):
        cols = []
        for px in (0, 1):
            p = 2 * py + px
            cols.append(Y[:, py:py + h, px:px + wd, p, :])
        rows.append(jnp.stack(cols, axis=3))                        # (n,h,w,2,co)
    P = jnp.stack(rows, axis=3)                                     # (n,h,w,2,2,co)
    return P.transpose(0, 1, 3, 2, 4, 5).reshape(n, 2 * h, 2 * wd, cout)


# ------------------------------ buildUnet model --------------------------------

def init_unet_params(key, ngf, input_nc, output_nc):
    def nrm(k, shape, scale=0.1):
        return scale * jax.random.normal(k, shape, jnp.float32)

    # outermost -> innermost, mirroring buildUnet.__init__ nesting
    specs = [
        dict(type='R',      input_nc=input_nc, inner_nc=ngf,     output_nc=output_nc),
        dict(type='inner',  input_nc=ngf,      inner_nc=2 * ngf, output_nc=ngf),
        dict(type='inner',  input_nc=2 * ngf,  inner_nc=4 * ngf, output_nc=2 * ngf),
        dict(type='inner',  input_nc=4 * ngf,  inner_nc=8 * ngf, output_nc=4 * ngf),
        dict(type='inner',  input_nc=8 * ngf,  inner_nc=8 * ngf, output_nc=8 * ngf),
        dict(type='inner',  input_nc=8 * ngf,  inner_nc=8 * ngf, output_nc=8 * ngf),
        dict(type='inner',  input_nc=8 * ngf,  inner_nc=8 * ngf, output_nc=8 * ngf),
        dict(type='center', input_nc=8 * ngf,  inner_nc=8 * ngf, output_nc=8 * ngf),
    ]
    blocks = []
    for s in specs:
        key, k1, k2, k3, k4, k5, k6 = jax.random.split(key, 7)
        inc, innc, outc = s['input_nc'], s['inner_nc'], s['output_nc']
        p = dict(type=s['type'])
        p['e_w'] = nrm(k1, (innc, inc, 4, 4))                  # Conv2d (Cout,Cin,4,4)
        d_in = innc if s['type'] == 'center' else 2 * innc
        p['d_w'] = nrm(k2, (d_in, outc, 4, 4))                 # ConvT  (Cin,Cout,4,4)
        if s['type'] == 'inner':
            p['e_gamma'] = 1.0 + nrm(k3, (innc,))
            p['e_beta'] = nrm(k4, (innc,))
        if s['type'] in ('inner', 'center'):
            p['d_gamma'] = 1.0 + nrm(k5, (outc,))
            p['d_beta'] = nrm(k6, (outc,))
        blocks.append(p)
    return blocks


def _forward_blocks(piece, blocks, idx):
    """Returns the final output for the 'R' block, otherwise a pair of
    (tensor, pending_scale, pending_shift) pieces forming cat([x, model(x)])."""
    b = blocks[idx]
    t = b['type']
    if t == 'R':
        # [e_conv, inner, ReLU, d_conv, Tanh]; no skip concat, no BN
        h, _ = conv_down(piece, b['e_w'], act=None)
        cx, cy = _forward_blocks((h, None, None), blocks, idx + 1)
        return conv_up([cx, cy], b['d_w'], act='relu', out_act='tanh',
                       out_dtype=jnp.float32)
    if t == 'center':
        # [LeakyReLU, e_conv, ReLU, d_conv, BN, Dropout]; cat([x, model(x)])
        h, _ = conv_down(piece, b['e_w'], act='leaky_relu')
        y = conv_up([(h, None, None)], b['d_w'], act='relu')
        n_, hh, ww, cc = y.shape
        d_stats = pallas_channel_stats(y.reshape(-1, cc))
        sd, td = bn_scale_shift(d_stats, n_ * hh * ww, b['d_gamma'], b['d_beta'])
        # TODO(synk): nn.Dropout(0.5) training-mode stochasticity omitted (identity).
        return piece, (y, sd, td)
    # 'inner': [LeakyReLU, e_conv, BN, inner, ReLU, d_conv, BN(, Dropout)]
    h, e_stats = conv_down(piece, b['e_w'], act='leaky_relu', want_stats=True)
    n_, hh, ww, _ = h.shape
    se, te = bn_scale_shift(e_stats.sum(axis=0), n_ * hh * ww,
                            b['e_gamma'], b['e_beta'])
    cx, cy = _forward_blocks((h, se, te), blocks, idx + 1)
    y = conv_up([cx, cy], b['d_w'], act='relu')
    n_, oh, ow, oc = y.shape
    d_stats = pallas_channel_stats(y.reshape(-1, oc))
    sd, td = bn_scale_shift(d_stats, n_ * oh * ow, b['d_gamma'], b['d_beta'])
    # TODO(synk): Dropout(0.5) for useDO blocks omitted (identity / eval).
    return piece, (y, sd, td)


def build_unet_forward(x_nchw, blocks):
    x = jnp.transpose(x_nchw, (0, 2, 3, 1))        # NCHW -> NHWC
    y = _forward_blocks((x, None, None), blocks, 0)
    return jnp.transpose(y, (0, 3, 1, 2))          # NHWC -> NCHW


# ------------------------ f32 references for self-check -------------------------

def _ref_conv_down(x, w):
    return lax.conv_general_dilated(
        x, jnp.transpose(w, (2, 3, 1, 0)), window_strides=(2, 2),
        padding=((1, 1), (1, 1)), dimension_numbers=('NHWC', 'HWIO', 'NHWC'))


def _ref_conv_up(x, wt):
    w_eq = jnp.transpose(wt[:, :, ::-1, ::-1], (2, 3, 0, 1))
    return lax.conv_general_dilated(
        x, w_eq, window_strides=(1, 1), padding=((2, 2), (2, 2)),
        lhs_dilation=(2, 2), dimension_numbers=('NHWC', 'HWIO', 'NHWC'))


# ----------------------------------- main ---------------------------------------

if __name__ == "__main__":
    key = jax.random.PRNGKey(0)
    kp, kx, k1, k2, k3 = jax.random.split(key, 5)

    # numeric self-check of the bf16 Pallas conv lowerings vs f32 XLA convs
    xt = 0.5 * jax.random.normal(k1, (2, 6, 6, 6), jnp.float32)
    wdn = 0.2 * jax.random.normal(k2, (5, 6, 4, 4), jnp.float32)
    wup = 0.2 * jax.random.normal(k3, (6, 5, 4, 4), jnp.float32)
    got_d, _ = conv_down((xt, None, None), wdn, act=None, out_dtype=jnp.float32)
    got_u = conv_up([(xt, None, None)], wup, act=None, out_dtype=jnp.float32)
    for got, ref in ((got_d, _ref_conv_down(xt, wdn)),
                     (got_u, _ref_conv_up(xt, wup))):
        err = jnp.max(jnp.abs(got - ref)) / (jnp.max(jnp.abs(ref)) + 1e-6)
        assert float(err) < 3e-2, float(err)

    # full buildUnet forward (ngf kept small; structurally identical to ngf=64)
    ngf, input_nc, output_nc = 4, 3, 2
    N, H, W = 1, 256, 256          # 8 stride-2 levels => spatial must be >= 256

    blocks = init_unet_params(kp, ngf, input_nc, output_nc)
    x = jax.random.normal(kx, (N, input_nc, H, W), jnp.float32)

    fwd = jax.jit(lambda xx: build_unet_forward(xx, blocks))
    y = jax.block_until_ready(fwd(x))

    assert y.shape == (N, output_nc, H, W), y.shape
    assert bool(jnp.all(jnp.isfinite(y)))
    print("KERNEL_OK")
</pallas_src>

<mosaic_0001>
module attributes {stable_mosaic.version = 11 : i64} {
  func.func @_mm_kernel(%arg0: i32, %arg1: i32, %arg2: i32, %arg3: memref<32x96xbf16, #tpu.memory_space<vmem>>, %arg4: memref<96x5xbf16, #tpu.memory_space<vmem>>, %arg5: memref<32x5xf32, #tpu.memory_space<vmem>>, %arg6: memref<32x5xf32, #tpu.memory_space<vmem>>) attributes {dimension_semantics = [#tpu.dimension_semantics<parallel>, #tpu.dimension_semantics<parallel>, #tpu.dimension_semantics<arbitrary>], iteration_bounds = array<i64: 1, 1, 1>, scalar_prefetch = 0 : i64, scratch_operands = 1 : i64, tpu.core_type = #tpu.core_type<tc>, window_params = [{transform_indices = @transform_0, window_bounds = array<i64: 32, 96>}, {transform_indices = @transform_1, window_bounds = array<i64: 96, 5>}, {transform_indices = @transform_2, window_bounds = array<i64: 32, 5>}]} {
    %c0_i32 = arith.constant 0 : i32
    %0 = arith.cmpi eq, %arg2, %c0_i32 : i32
    %1 = arith.extui %0 : i1 to i32
    %c0_i32_0 = arith.constant 0 : i32
    %2 = arith.cmpi ne, %1, %c0_i32_0 : i32
    scf.if %2 {
      %cst_10 = arith.constant 0.000000e+00 : f32
      %12 = vector.broadcast %cst_10 : f32 to vector<32x5xf32>
      %c0_11 = arith.constant 0 : index
      %c0_12 = arith.constant 0 : index
      %13 = vector.load %arg6[%c0_11, %c0_12] : memref<32x5xf32, #tpu.memory_space<vmem>>, vector<32x5xf32>
      tpu.vector_store %arg6[%c0_11, %c0_12], %12 {strides = array<i32>} : memref<32x5xf32, #tpu.memory_space<vmem>>, vector<32x5xf32>,
    } else {
    }
    %c0 = arith.constant 0 : index
    %c0_1 = arith.constant 0 : index
    %3 = vector.load %arg3[%c0, %c0_1] : memref<32x96xbf16, #tpu.memory_space<vmem>>, vector<32x96xbf16>
    %c0_2 = arith.constant 0 : index
    %c0_3 = arith.constant 0 : index
    %4 = vector.load %arg6[%c0_2, %c0_3] : memref<32x5xf32, #tpu.memory_space<vmem>>, vector<32x5xf32>
    %c0_4 = arith.constant 0 : index
    %c0_5 = arith.constant 0 : index
    %5 = vector.load %arg4[%c0_4, %c0_5] : memref<96x5xbf16, #tpu.memory_space<vmem>>, vector<96x5xbf16>
    %cst = arith.constant dense<0.000000e+00> : vector<32x5xf32>
    %6 = tpu.matmul %3, %5, %cst {dimension_numbers = #tpu.dot_dimension_numbers<[1], [0], [0], [1], [0, 0, 1, 1], [], []>} : vector<32x96xbf16>, vector<96x5xbf16>, vector<32x5xf32> -> vector<32x5xf32>
    %7 = arith.addf %4, %6 : vector<32x5xf32>
    %c0_6 = arith.constant 0 : index
    %c0_7 = arith.constant 0 : index
    %8 = vector.load %arg6[%c0_6, %c0_7] : memref<32x5xf32, #tpu.memory_space<vmem>>, vector<32x5xf32>
    tpu.vector_store %arg6[%c0_6, %c0_7], %7 {strides = array<i32>} : memref<32x5xf32, #tpu.memory_space<vmem>>, vector<32x5xf32>,
    %c0_i32_8 = arith.constant 0 : i32
    %9 = arith.cmpi eq, %arg2, %c0_i32_8 : i32
    %10 = arith.extui %9 : i1 to i32
    %c0_i32_9 = arith.constant 0 : i32
    %11 = arith.cmpi ne, %10, %c0_i32_9 : i32
    scf.if %11 {
      %c0_10 = arith.constant 0 : index
      %c0_11 = arith.constant 0 : index
      %12 = vector.load %arg6[%c0_10, %c0_11] : memref<32x5xf32, #tpu.memory_space<vmem>>, vector<32x5xf32>
      %c0_12 = arith.constant 0 : index
      %c0_13 = arith.constant 0 : index
      %13 = vector.load %arg5[%c0_12, %c0_13] : memref<32x5xf32, #tpu.memory_space<vmem>>, vector<32x5xf32>
      tpu.vector_store %arg5[%c0_12, %c0_13], %12 {strides = array<i32>} : memref<32x5xf32, #tpu.memory_space<vmem>>, vector<32x5xf32>,
    } else {
    }
    return
  }
  func.func @transform_0(%arg0: i32, %arg1: i32, %arg2: i32) -> (i32, i32) {
    %c0_i32 = arith.constant 0 : i32
    %0 = arith.subi %arg2, %c0_i32 : i32
    %c0_i32_0 = arith.constant 0 : i32
    %1 = arith.maxsi %0, %c0_i32_0 : i32
    %c0_i32_1 = arith.constant 0 : i32
    %2 = arith.minsi %1, %c0_i32_1 : i32
    %c0_i32_2 = arith.constant 0 : i32
    return %arg0, %2 : i32, i32
  }
  func.func @transform_1(%arg0: i32, %arg1: i32, %arg2: i32) -> (i32, i32) {
    %c0_i32 = arith.constant 0 : i32
    %0 = arith.subi %arg2, %c0_i32 : i32
    %c0_i32_0 = arith.constant 0 : i32
    %1 = arith.maxsi %0, %c0_i32_0 : i32
    %c0_i32_1 = arith.constant 0 : i32
    %2 = arith.minsi %1, %c0_i32_1 : i32
    %c0_i32_2 = arith.constant 0 : i32
    return %2, %arg1 : i32, i32
  }
  func.func @transform_2(%arg0: i32, %arg1: i32, %arg2: i32) -> (i32, i32) {
    %c0_i32 = arith.constant 0 : i32
    return %arg0, %arg1 : i32, i32
  }
}

</mosaic_0001>

<llo_original>
// kernel: tpu_custom_call.1
$region0: #{tpu_custom_call.1}
  #allocation0 [shape = 'u32[]', space=smem, size = 0x4, offset = 0x4, fixed_abs, tag = 'smem constant byte address 0x4 - core index']
  #allocation1 [shape = 'u32[144,128]{1,0:T(1,128)}', space=vmem, size = 0x12000, scoped, tag = 'internal scratch']
  #allocation2 [shape = 'f32[32,5]{1,0:T(8,128)}', space=vmem, size = 0x4000, scoped, tag = 'scratch operand']
  %s0 = inlined_call_operand.vmem [shape: bf16[32,96], index: 0, kind: input, shape index: {}]
  %s1 = inlined_call_operand.vmem [shape: bf16[96,5], index: 1, kind: input, shape index: {}]
  %s2 = inlined_call_operand.vmem [shape: f32[32,5], index: 2, kind: output, shape index: {}]
  %s3 = sld [smem:[#allocation0]]
  $region26: #{tpu_custom_call.1} parent=0
    _
  %s5 = ssub.s32 1, %s3
  %s6 = scalar_select 0, %s5, %s3
  // Predicated region
  $region2: #{tpu_custom_call.1} parent=0 // pred_check
    _
  $region3: #{tpu_custom_call.1} parent=0 // pred_check_branch
    %8 = sbr.rel (0) target = $region5
  $region4: #{tpu_custom_call.1} parent=0 // pred_region
    _
  $region5: #{tpu_custom_call.1} parent=0 // pred_fallthru
    _
  // Predicated region
  $region6: #{tpu_custom_call.1} parent=0 // pred_check
    _
  $region7: #{tpu_custom_call.1} parent=0 // pred_check_branch
    %10 = sbr.rel (0) target = $region9
  $region8: #{tpu_custom_call.1} parent=0 // pred_region
    _
  $region9: #{tpu_custom_call.1} parent=0 // pred_fallthru
    _
  %p12 = scmp.eq.s32.totalorder 0, 0
  // Predicated region
  $region10: #{tpu_custom_call.1} parent=0 // pred_check
    %p13 = pneg %p12
  $region11: #{tpu_custom_call.1} parent=0 // pred_check_branch
    %15 = sbr.rel (%p13) target = $region13
  $region12: #{tpu_custom_call.1} parent=0 // pred_region
    %vm16 = vcmask 39936
    %17 = vst.msk [vmem:[#allocation2] sm:$0xff] %vm16, 0.0
    %18 = vst.msk [vmem:[#allocation2 + $0x8] sm:$0xff] %vm16, 0.0
    %19 = vst.msk [vmem:[#allocation2 + $0x10] sm:$0xff] %vm16, 0.0
    %20 = vst.msk [vmem:[#allocation2 + $0x18] sm:$0xff] %vm16, 0.0
  $region13: #{tpu_custom_call.1} parent=0 // pred_fallthru
    _
  %v21 = vld [vmem:[%s0] sm:$0xf]
  %v22 = vld [vmem:[%s0 + $0x4] sm:$0xf]
  %v23 = vld [vmem:[%s0 + $0x8] sm:$0xf]
  %v24 = vld [vmem:[%s0 + $0xc] sm:$0xf]
  %v25 = vld [vmem:[#allocation2] sm:$0xff]
  %v26 = vld [vmem:[#allocation2 + $0x8] sm:$0xff]
  %v27 = vld [vmem:[#allocation2 + $0x10] sm:$0xff]
  %v28 = vld [vmem:[#allocation2 + $0x18] sm:$0xff]
  %v29 = vld [vmem:[%s1] sm:$0xf]
  %v30 = vld [vmem:[%s1 + $0x4] sm:$0xf]
  %v31 = vld [vmem:[%s1 + $0x8] sm:$0xf]
  %v32 = vld [vmem:[%s1 + $0xc] sm:$0xf]
  %v33 = vld [vmem:[%s1 + $0x10] sm:$0xf]
  %v34 = vld [vmem:[%s1 + $0x14] sm:$0xf]
  %v35 = vld [vmem:[%s1 + $0x18] sm:$0xf]
  %v36 = vld [vmem:[%s1 + $0x1c] sm:$0xf]
  %v37 = vld [vmem:[%s1 + $0x20] sm:$0xf]
  %v38 = vld [vmem:[%s1 + $0x24] sm:$0xf]
  %v39 = vld [vmem:[%s1 + $0x28] sm:$0xf]
  %v40 = vld [vmem:[%s1 + $0x2c] sm:$0xf]
  %v45 = vunpack.c.l.b16 %v21
  %v46 = vunpack.c.l.b16 %v22
  %v47 = vunpack.c.l.b16 %v23
  %v48 = vunpack.c.l.b16 %v24
  %v49 = vpack.c.b16 %v46, %v45
  %v50 = vpack.c.b16 %v48, %v47
  %v63 = vunpack.c.l.b16 %v29
  %v64 = vunpack.c.l.b16 %v30
  %v65 = vunpack.c.l.b16 %v31
  %v66 = vunpack.c.l.b16 %v32
  %v67 = vunpack.c.l.b16 %v33
  %v68 = vunpack.c.l.b16 %v34
  %v69 = vunpack.c.l.b16 %v35
  %v70 = vunpack.c.l.b16 %v36
  %v71 = vunpack.c.l.b16 %v37
  %v72 = vunpack.c.l.b16 %v38
  %v73 = vunpack.c.l.b16 %v39
  %v74 = vunpack.c.l.b16 %v40
  %v75 = vpack.c.b16 %v64, %v63
  %v76 = vpack.c.b16 %v66, %v65
  %v77 = vpack.c.b16 %v68, %v67
  %v78 = vpack.c.b16 %v70, %v69
  %v79 = vpack.c.b16 %v72, %v71
  %v80 = vpack.c.b16 %v74, %v73
  %vm87 = vcmask 785408
  %v89 = vsel %vm87, %v49, 0
  %v92 = vsel %vm87, %v50, 0
  %94 = vmatprep.subr.bf16.mxu0 0
  %95 = vmatpush1.bf16.msra.mxu0 0
  %96 = vmatprep.subr.bf16.mxu0 0
  %97 = vmatpush1.bf16.msra.mxu0 0
  %98 = vmatprep.subr.bf16.mxu0 0
  %99 = vmatpush1.bf16.msra.mxu0 %v80
  %100 = vmatprep.subr.bf16.mxu0 0
  %101 = vmatpush1.bf16.msra.mxu0 %v79
  %102 = vmatprep.subr.bf16.mxu0 0
  %103 = vmatpush1.bf16.msra.mxu0 %v78
  %104 = vmatprep.subr.bf16.mxu0 0
  %105 = vmatpush1.bf16.msra.mxu0 %v77
  %106 = vmatprep.subr.bf16.mxu0 0
  %107 = vmatpush1.bf16.msra.mxu0 %v76
  %108 = vmatprep.subr.bf16.mxu0 0
  %109 = vmatpush1.bf16.msra.mxu0 %v75
  %110 = vmatprep.subr.bf16.mxu0 0
  %111 = vmatpush2.bf16.msra.mxu0 0
  %112 = vmatprep.subr.bf16.mxu0 0
  %113 = vmatpush2.bf16.msra.mxu0 0
  %114 = vmatprep.subr.bf16.mxu0 0
  %115 = vmatpush2.bf16.msra.mxu0 0
  %116 = vmatprep.subr.bf16.mxu0 0
  %117 = vmatpush2.bf16.msra.mxu0 0
  %118 = vmatprep.subr.bf16.mxu0 0
  %119 = vmatpush2.bf16.msra.mxu0 0
  %120 = vmatprep.subr.bf16.mxu0 0
  %121 = vmatpush2.bf16.msra.mxu0 0
  %122 = vmatprep.subr.bf16.mxu0 0
  %123 = vmatpush2.bf16.msra.mxu0 0
  %124 = vmatprep.subr.bf16.mxu0 0
  %125 = vmatpush2.bf16.msra.mxu0 0
  %126 = vmatprep.mubr.bf16.mxu0 0
  %127 = vmatmul.mubr.bf16.gmra.mxu0 %v89
  %v128 = vpop.f32.mrf.mxu0
  %v129 = vadd.f32 0.0, %v128
  %v130 = vpop.f32.mrf.mxu0
  %v131 = vpop.f32.mrf.mxu0
  %v132 = vadd.f32 0.0, %v131
  %v133 = vpop.f32.mrf.mxu0
  %134 = vmatprep.mubr.bf16.mxu0 0
  %135 = vmatmul.mubr.bf16.gmra.mxu0 %v92
  %v136 = vpop.f32.mrf.mxu0
  %v137 = vadd.f32 0.0, %v136
  %v138 = vpop.f32.mrf.mxu0
  %v139 = vpop.f32.mrf.mxu0
  %v140 = vadd.f32 0.0, %v139
  %v141 = vpop.f32.mrf.mxu0
  %142 = vdwg.mxu0
  %v143 = vadd.f32 %v25, %v129
  %v144 = vadd.f32 %v26, %v132
  %v145 = vadd.f32 %v27, %v137
  %v146 = vadd.f32 %v28, %v140
  %vm147 = vcmask 39936
  %148 = vst.msk [vmem:[#allocation2] sm:$0xff] %vm147, %v143
  %149 = vst.msk [vmem:[#allocation2 + $0x8] sm:$0xff] %vm147, %v144
  %150 = vst.msk [vmem:[#allocation2 + $0x10] sm:$0xff] %vm147, %v145
  %151 = vst.msk [vmem:[#allocation2 + $0x18] sm:$0xff] %vm147, %v146
  // Predicated region
  $region14: #{tpu_custom_call.1} parent=0 // pred_check
    %p152 = pneg %p12
  $region15: #{tpu_custom_call.1} parent=0 // pred_check_branch
    %154 = sbr.rel (%p152) target = $region17
  $region16: #{tpu_custom_call.1} parent=0 // pred_region
    %v155 = vld [vmem:[#allocation2] sm:$0xff]
    %v156 = vld [vmem:[#allocation2 + $0x8] sm:$0xff]
    %v157 = vld [vmem:[#allocation2 + $0x10] sm:$0xff]
    %v158 = vld [vmem:[#allocation2 + $0x18] sm:$0xff]
    %159 = vst.msk [vmem:[%s2] sm:$0xff] %vm147, %v155
    %160 = vst.msk [vmem:[%s2 + $0x8] sm:$0xff] %vm147, %v156
    %161 = vst.msk [vmem:[%s2 + $0x10] sm:$0xff] %vm147, %v157
    %162 = vst.msk [vmem:[%s2 + $0x18] sm:$0xff] %vm147, %v158
  $region17: #{tpu_custom_call.1} parent=0 // pred_fallthru
    _
  // Predicated region
  $region18: #{tpu_custom_call.1} parent=0 // pred_check
    _
  $region19: #{tpu_custom_call.1} parent=0 // pred_check_branch
    %164 = sbr.rel (0) target = $region21
  $region20: #{tpu_custom_call.1} parent=0 // pred_region
    _
  $region21: #{tpu_custom_call.1} parent=0 // pred_fallthru
    _
  // Predicated region
  $region22: #{tpu_custom_call.1} parent=0 // pred_check
    _
  $region23: #{tpu_custom_call.1} parent=0 // pred_check_branch
    %166 = sbr.rel (0) target = $region25
  $region24: #{tpu_custom_call.1} parent=0 // pred_region
    _
  $region25: #{tpu_custom_call.1} parent=0 // pred_fallthru
    _

</llo_original>
